<compile_context>
chip_gen: v6e
topology: v6e:2x2x1
jax: 0.10.0
libtpu: 0.0.40
codegen_flags: <defaults>
</compile_context>

<pallas_src>
import functools

import jax
import jax.numpy as jnp
from jax.experimental import pallas as pl
from jax.experimental.pallas import tpu as pltpu


# ----------------------------------------------------------------------------
# Fused kernel: PixelNorm + all WeightedLinear (+ReLU) layers in one pass.
# refs = (z_ref, w0_ref, b0_ref, w1_ref, b1_ref, ..., out_ref)
#   wI_ref : (d_in, d_out)  (already transposed -> y = x @ W_t)
#   bI_ref : (1, d_out)
# ----------------------------------------------------------------------------
def mapping_kernel(*refs, scales, relus, eps):
    z_ref = refs[0]
    out_ref = refs[-1]
    wb_refs = refs[1:-1]

    x = z_ref[...]                                              # (B, Z) f32

    # PixelNorm over the feature dim (torch dim=1). Cross-lane mean -> XLU,
    # rsqrt -> EUP; both off the VALU critical path.
    x = x * jax.lax.rsqrt(jnp.mean(x * x, axis=1, keepdims=True) + eps)

    # WeightedLinear stack, fully unrolled (static Python loop). Activations
    # never leave vregs; one MXU dot per layer, f32 accumulation.
    for i, (scale, relu) in enumerate(zip(scales, relus)):
        w_t = wb_refs[2 * i][...]                               # (d_in, d_out)
        b = wb_refs[2 * i + 1][...]                             # (1, d_out)
        x = jnp.dot(x * scale, w_t, preferred_element_type=jnp.float32) + b
        if relu:
            x = jnp.maximum(x, 0.0)

    out_ref[...] = x


# ----------------------------------------------------------------------------
# Wrapper: one pallas_call, everything VMEM-resident, jitted.
# ----------------------------------------------------------------------------
@functools.partial(jax.jit, static_argnames=("scales", "relus"))
def mapping_network(z, flat_params, scales, relus):
    batch = z.shape[0]
    out_dim = flat_params[-2].shape[1]                          # last layer d_out
    n_in = 1 + len(flat_params)

    kernel = functools.partial(mapping_kernel, scales=scales, relus=relus, eps=1e-8)
    return pl.pallas_call(
        kernel,
        out_shape=jax.ShapeDtypeStruct((batch, out_dim), jnp.float32),
        in_specs=[pl.BlockSpec(memory_space=pltpu.MemorySpace.VMEM)] * n_in,
        out_specs=pl.BlockSpec(memory_space=pltpu.MemorySpace.VMEM),
    )(z, *flat_params)


# ----------------------------------------------------------------------------
# Pure-JAX reference (for a correctness check only).
# ----------------------------------------------------------------------------
def mapping_reference(z, flat_params, scales, relus):
    x = z / jnp.sqrt(jnp.mean(z * z, axis=1, keepdims=True) + 1e-8)
    for i, (scale, relu) in enumerate(zip(scales, relus)):
        w_t = flat_params[2 * i]
        b = flat_params[2 * i + 1]
        x = (x * scale) @ w_t + b
        if relu:
            x = jnp.maximum(x, 0.0)
    return x


# ----------------------------------------------------------------------------
if __name__ == "__main__":
    # Globals implied by the reference module (free to choose):
    batch = 8          # sublane-aligned
    z_dim = 128        # lane-aligned -> (8, 128) vreg-exact input/output tiles
    hidden_dim = 32
    num_layers = 4

    key = jax.random.PRNGKey(0)
    zkey, *wkeys = jax.random.split(key, num_layers + 1)

    z = jax.random.normal(zkey, (batch, z_dim), jnp.float32)

    # Build parameters exactly as the PyTorch __init__ does:
    #   weight ~ N(0, 1) (stored pre-transposed as (d_in, d_out)), bias = 0,
    #   scale = sqrt(2 / d_in); ReLU after every layer except the last.
    flat_params = []
    scales = []
    relus = []
    for i in range(num_layers):
        if i == 0:
            din, dout, relu = z_dim, hidden_dim, True
        elif i == num_layers - 1:
            din, dout, relu = hidden_dim, z_dim, False
        else:
            din, dout, relu = hidden_dim, hidden_dim, True
        w_t = jax.random.normal(wkeys[i], (din, dout), jnp.float32)
        b = jnp.zeros((1, dout), jnp.float32)
        flat_params += [w_t, b]
        scales.append((2.0 / din) ** 0.5)
        relus.append(relu)

    flat_params = tuple(flat_params)
    scales = tuple(scales)
    relus = tuple(relus)

    out = mapping_network(z, flat_params, scales, relus)
    out = jax.block_until_ready(out)

    ref = mapping_reference(z, flat_params, scales, relus)

    assert out.shape == (batch, z_dim), out.shape
    assert bool(jnp.all(jnp.isfinite(out)))
    # Generous tolerance: kernel and XLA reference may take different MXU f32
    # decomposition paths; real bugs (wrong transpose / scale / missing ReLU)
    # would miss by far more than this.
    assert bool(jnp.allclose(out, ref, rtol=5e-2, atol=5e-2)), float(
        jnp.max(jnp.abs(out - ref)))

    print("KERNEL_OK")
</pallas_src>

<mosaic_0001>
module attributes {stable_mosaic.version = 11 : i64} {
  func.func @mapping_kernel(%arg0: memref<8x128xf32, #tpu.memory_space<vmem>>, %arg1: memref<128x32xf32, #tpu.memory_space<vmem>>, %arg2: memref<1x32xf32, #tpu.memory_space<vmem>>, %arg3: memref<32x32xf32, #tpu.memory_space<vmem>>, %arg4: memref<1x32xf32, #tpu.memory_space<vmem>>, %arg5: memref<32x32xf32, #tpu.memory_space<vmem>>, %arg6: memref<1x32xf32, #tpu.memory_space<vmem>>, %arg7: memref<32x128xf32, #tpu.memory_space<vmem>>, %arg8: memref<1x128xf32, #tpu.memory_space<vmem>>, %arg9: memref<8x128xf32, #tpu.memory_space<vmem>>) attributes {dimension_semantics = [], scalar_prefetch = 0 : i64, scratch_operands = 0 : i64, tpu.core_type = #tpu.core_type<tc>} {
    %c0 = arith.constant 0 : index
    %c0_0 = arith.constant 0 : index
    %0 = vector.load %arg0[%c0, %c0_0] : memref<8x128xf32, #tpu.memory_space<vmem>>, vector<8x128xf32>
    %1 = arith.mulf %0, %0 : vector<8x128xf32>
    %cst = arith.constant dense<0.000000e+00> : vector<8xf32>
    %2 = vector.multi_reduction <add>, %1, %cst [1] : vector<8x128xf32> to vector<8xf32>
    %3 = vector.shape_cast %2 : vector<8xf32> to vector<8x1xf32>
    %cst_1 = arith.constant 1.280000e+02 : f32
    %4 = vector.broadcast %cst_1 : f32 to vector<8x1xf32>
    %5 = arith.divf %3, %4 : vector<8x1xf32>
    %cst_2 = arith.constant 9.99999993E-9 : f32
    %6 = vector.broadcast %cst_2 : f32 to vector<8x1xf32>
    %7 = arith.addf %5, %6 : vector<8x1xf32>
    %8 = math.rsqrt %7 : vector<8x1xf32>
    %9 = vector.broadcast %8 : vector<8x1xf32> to vector<8x128xf32>
    %10 = arith.mulf %0, %9 : vector<8x128xf32>
    %c0_3 = arith.constant 0 : index
    %c0_4 = arith.constant 0 : index
    %11 = vector.load %arg1[%c0_3, %c0_4] : memref<128x32xf32, #tpu.memory_space<vmem>>, vector<128x32xf32>
    %c0_5 = arith.constant 0 : index
    %c0_6 = arith.constant 0 : index
    %12 = vector.load %arg2[%c0_5, %c0_6] : memref<1x32xf32, #tpu.memory_space<vmem>>, vector<1x32xf32>
    %cst_7 = arith.constant 1.250000e-01 : f32
    %13 = vector.broadcast %cst_7 : f32 to vector<8x128xf32>
    %14 = arith.mulf %10, %13 : vector<8x128xf32>
    %cst_8 = arith.constant dense<0.000000e+00> : vector<8x32xf32>
    %15 = tpu.matmul %14, %11, %cst_8 {dimension_numbers = #tpu.dot_dimension_numbers<[1], [0], [0], [1], [0, 0, 1, 1], [], []>} : vector<8x128xf32>, vector<128x32xf32>, vector<8x32xf32> -> vector<8x32xf32>
    %16 = vector.broadcast %12 : vector<1x32xf32> to vector<8x32xf32>
    %17 = arith.addf %15, %16 : vector<8x32xf32>
    %cst_9 = arith.constant 0.000000e+00 : f32
    %18 = vector.broadcast %cst_9 : f32 to vector<8x32xf32>
    %19 = arith.maximumf %17, %18 : vector<8x32xf32>
    %c0_10 = arith.constant 0 : index
    %c0_11 = arith.constant 0 : index
    %20 = vector.load %arg3[%c0_10, %c0_11] : memref<32x32xf32, #tpu.memory_space<vmem>>, vector<32x32xf32>
    %c0_12 = arith.constant 0 : index
    %c0_13 = arith.constant 0 : index
    %21 = vector.load %arg4[%c0_12, %c0_13] : memref<1x32xf32, #tpu.memory_space<vmem>>, vector<1x32xf32>
    %cst_14 = arith.constant 2.500000e-01 : f32
    %22 = vector.broadcast %cst_14 : f32 to vector<8x32xf32>
    %23 = arith.mulf %19, %22 : vector<8x32xf32>
    %cst_15 = arith.constant dense<0.000000e+00> : vector<8x32xf32>
    %24 = tpu.matmul %23, %20, %cst_15 {dimension_numbers = #tpu.dot_dimension_numbers<[1], [0], [0], [1], [0, 0, 1, 1], [], []>} : vector<8x32xf32>, vector<32x32xf32>, vector<8x32xf32> -> vector<8x32xf32>
    %25 = vector.broadcast %21 : vector<1x32xf32> to vector<8x32xf32>
    %26 = arith.addf %24, %25 : vector<8x32xf32>
    %cst_16 = arith.constant 0.000000e+00 : f32
    %27 = vector.broadcast %cst_16 : f32 to vector<8x32xf32>
    %28 = arith.maximumf %26, %27 : vector<8x32xf32>
    %c0_17 = arith.constant 0 : index
    %c0_18 = arith.constant 0 : index
    %29 = vector.load %arg5[%c0_17, %c0_18] : memref<32x32xf32, #tpu.memory_space<vmem>>, vector<32x32xf32>
    %c0_19 = arith.constant 0 : index
    %c0_20 = arith.constant 0 : index
    %30 = vector.load %arg6[%c0_19, %c0_20] : memref<1x32xf32, #tpu.memory_space<vmem>>, vector<1x32xf32>
    %cst_21 = arith.constant 2.500000e-01 : f32
    %31 = vector.broadcast %cst_21 : f32 to vector<8x32xf32>
    %32 = arith.mulf %28, %31 : vector<8x32xf32>
    %cst_22 = arith.constant dense<0.000000e+00> : vector<8x32xf32>
    %33 = tpu.matmul %32, %29, %cst_22 {dimension_numbers = #tpu.dot_dimension_numbers<[1], [0], [0], [1], [0, 0, 1, 1], [], []>} : vector<8x32xf32>, vector<32x32xf32>, vector<8x32xf32> -> vector<8x32xf32>
    %34 = vector.broadcast %30 : vector<1x32xf32> to vector<8x32xf32>
    %35 = arith.addf %33, %34 : vector<8x32xf32>
    %cst_23 = arith.constant 0.000000e+00 : f32
    %36 = vector.broadcast %cst_23 : f32 to vector<8x32xf32>
    %37 = arith.maximumf %35, %36 : vector<8x32xf32>
    %c0_24 = arith.constant 0 : index
    %c0_25 = arith.constant 0 : index
    %38 = vector.load %arg7[%c0_24, %c0_25] : memref<32x128xf32, #tpu.memory_space<vmem>>, vector<32x128xf32>
    %c0_26 = arith.constant 0 : index
    %c0_27 = arith.constant 0 : index
    %39 = vector.load %arg8[%c0_26, %c0_27] : memref<1x128xf32, #tpu.memory_space<vmem>>, vector<1x128xf32>
    %cst_28 = arith.constant 2.500000e-01 : f32
    %40 = vector.broadcast %cst_28 : f32 to vector<8x32xf32>
    %41 = arith.mulf %37, %40 : vector<8x32xf32>
    %cst_29 = arith.constant dense<0.000000e+00> : vector<8x128xf32>
    %42 = tpu.matmul %41, %38, %cst_29 {dimension_numbers = #tpu.dot_dimension_numbers<[1], [0], [0], [1], [0, 0, 1, 1], [], []>} : vector<8x32xf32>, vector<32x128xf32>, vector<8x128xf32> -> vector<8x128xf32>
    %43 = vector.broadcast %39 : vector<1x128xf32> to vector<8x128xf32>
    %44 = arith.addf %42, %43 : vector<8x128xf32>
    %c0_30 = arith.constant 0 : index
    %c0_31 = arith.constant 0 : index
    %45 = vector.load %arg9[%c0_30, %c0_31] : memref<8x128xf32, #tpu.memory_space<vmem>>, vector<8x128xf32>
    tpu.vector_store %arg9[%c0_30, %c0_31], %44 {strides = array<i32>} : memref<8x128xf32, #tpu.memory_space<vmem>>, vector<8x128xf32>,
    return
  }
}

</mosaic_0001>

<llo_original>
// kernel: mapping_network.1
$region0: #{mapping_network.1}
  #allocation0 [shape = 'u32[]', space=smem, size = 0x4, offset = 0x4, fixed_abs, tag = 'smem constant byte address 0x4 - core index']
  #allocation1 [shape = 'u32[144,128]{1,0:T(1,128)}', space=vmem, size = 0x12000, scoped, tag = 'internal scratch']
  %s0 = inlined_call_operand.vmem [shape: f32[8,128], index: 0, kind: input, shape index: {}]
  %s1 = inlined_call_operand.vmem [shape: f32[128,32], index: 1, kind: input, shape index: {}]
  %s2 = inlined_call_operand.vmem [shape: f32[1,32], index: 2, kind: input, shape index: {}]
  %s3 = inlined_call_operand.vmem [shape: f32[32,32], index: 3, kind: input, shape index: {}]
  %s4 = inlined_call_operand.vmem [shape: f32[1,32], index: 4, kind: input, shape index: {}]
  %s5 = inlined_call_operand.vmem [shape: f32[32,32], index: 5, kind: input, shape index: {}]
  %s6 = inlined_call_operand.vmem [shape: f32[1,32], index: 6, kind: input, shape index: {}]
  %s7 = inlined_call_operand.vmem [shape: f32[32,128], index: 7, kind: input, shape index: {}]
  %s8 = inlined_call_operand.vmem [shape: f32[1,128], index: 8, kind: input, shape index: {}]
  %s9 = inlined_call_operand.hbm [shape: f32[8,128], index: 9, kind: output, shape index: {}]
  %s10 = sld [smem:[#allocation0]]
  $region46: #{mapping_network.1} parent=0
    _
  %s12 = ssub.s32 1, %s10
  %s13 = scalar_select 0, %s12, %s10
  $region1: #{mapping_network.1} parent=0
    #allocation2 [shape = 'u8[4096]{0}', space=vmem, size = 0x1000, scoped, tag = 'output window, operand 0, single buffered']
    #allocation3 [shape = 's32[1]{0}', space=sflag, size = 0x4, scoped, tag = 'scoped memory for mapping_network.1']
    %14 = vsyncpa [#allocation3], 0
    // Predicated region
    $region2: #{mapping_network.1} parent=1 // pred_check
      _
    $region3: #{mapping_network.1} parent=1 // pred_check_branch
      %16 = sbr.rel (0) target = $region5
    $region4: #{mapping_network.1} parent=1 // pred_region
      _
    $region5: #{mapping_network.1} parent=1 // pred_fallthru
      _
    // Predicated region
    $region6: #{mapping_network.1} parent=1 // pred_check
      _
    $region7: #{mapping_network.1} parent=1 // pred_check_branch
      %18 = sbr.rel (0) target = $region9
    $region8: #{mapping_network.1} parent=1 // pred_region
      _
    $region9: #{mapping_network.1} parent=1 // pred_fallthru
      _
    // Predicated region
    $region10: #{mapping_network.1} parent=1 // pred_check
      _
    $region11: #{mapping_network.1} parent=1 // pred_check_branch
      %20 = sbr.rel (0) target = $region13
    $region12: #{mapping_network.1} parent=1 // pred_region
      _
    $region13: #{mapping_network.1} parent=1 // pred_fallthru
      _
    // Predicated region
    $region14: #{mapping_network.1} parent=1 // pred_check
      _
    $region15: #{mapping_network.1} parent=1 // pred_check_branch
      %22 = sbr.rel (0) target = $region17
    $region16: #{mapping_network.1} parent=1 // pred_region
      _
    $region17: #{mapping_network.1} parent=1 // pred_fallthru
      _
    // Predicated region
    $region18: #{mapping_network.1} parent=1 // pred_check
      _
    $region19: #{mapping_network.1} parent=1 // pred_check_branch
      %24 = sbr.rel (0) target = $region21
    $region20: #{mapping_network.1} parent=1 // pred_region
      _
    $region21: #{mapping_network.1} parent=1 // pred_fallthru
      _
    // Predicated region
    $region22: #{mapping_network.1} parent=1 // pred_check
      _
    $region23: #{mapping_network.1} parent=1 // pred_check_branch
      %26 = sbr.rel (0) target = $region25
    $region24: #{mapping_network.1} parent=1 // pred_region
      _
    $region25: #{mapping_network.1} parent=1 // pred_fallthru
      _
    // Predicated region
    $region26: #{mapping_network.1} parent=1 // pred_check
      _
    $region27: #{mapping_network.1} parent=1 // pred_check_branch
      %28 = sbr.rel (0) target = $region29
    $region28: #{mapping_network.1} parent=1 // pred_region
      _
    $region29: #{mapping_network.1} parent=1 // pred_fallthru
      _
    // Predicated region
    $region30: #{mapping_network.1} parent=1 // pred_check
      _
    $region31: #{mapping_network.1} parent=1 // pred_check_branch
      %30 = sbr.rel (0) target = $region33
    $region32: #{mapping_network.1} parent=1 // pred_region
      _
    $region33: #{mapping_network.1} parent=1 // pred_fallthru
      _
    // Predicated region
    $region34: #{mapping_network.1} parent=1 // pred_check
      _
    $region35: #{mapping_network.1} parent=1 // pred_check_branch
      %32 = sbr.rel (0) target = $region37
    $region36: #{mapping_network.1} parent=1 // pred_region
      _
    $region37: #{mapping_network.1} parent=1 // pred_fallthru
      _
    %v33 = vld [vmem:[%s0] sm:$0xff]
    %v34 = vmul.f32 %v33, %v33
    %35 = vadd.xlane.f32.xlu0 %v34
    %v36 = vpop.xlane.xlu0 %35
    %v37 = vrcp.pop 128.0
    %v38 = vmul.f32 %v36, %v37
    %v39 = vadd.f32 %v38, 1e-08
    %v40 = vrsqrt.pop %v39
    %v41 = vmul.f32 %v33, %v40
    %v42 = vld [vmem:[%s1] sm:$0xff]
    %v43 = vld [vmem:[%s1 + $0x8] sm:$0xff]
    %v44 = vld [vmem:[%s1 + $0x10] sm:$0xff]
    %v45 = vld [vmem:[%s1 + $0x18] sm:$0xff]
    %v46 = vld [vmem:[%s1 + $0x20] sm:$0xff]
    %v47 = vld [vmem:[%s1 + $0x28] sm:$0xff]
    %v48 = vld [vmem:[%s1 + $0x30] sm:$0xff]
    %v49 = vld [vmem:[%s1 + $0x38] sm:$0xff]
    %v50 = vld [vmem:[%s1 + $0x40] sm:$0xff]
    %v51 = vld [vmem:[%s1 + $0x48] sm:$0xff]
    %v52 = vld [vmem:[%s1 + $0x50] sm:$0xff]
    %v53 = vld [vmem:[%s1 + $0x58] sm:$0xff]
    %v54 = vld [vmem:[%s1 + $0x60] sm:$0xff]
    %v55 = vld [vmem:[%s1 + $0x68] sm:$0xff]
    %v56 = vld [vmem:[%s1 + $0x70] sm:$0xff]
    %v57 = vld [vmem:[%s1 + $0x78] sm:$0xff]
    %v58 = vld [vmem:[%s2] sm:$0x1]
    %v59 = vmul.f32 %v41, 0.125
    %v61 = vlaneseq
    %v62 = vshrl.u32 %v61, 7
    %v63 = vsub.s32 0, %v62
    %v64 = vrot.slane %v58, %v63
    %66 = vmatprep.subr.mxu0 0.0
    %67 = vmatpush1.msra.mxu0 %v57
    %68 = vmatprep.subr.mxu0 0.0
    %69 = vmatpush1.msra.mxu0 %v56
    %70 = vmatprep.subr.mxu0 0.0
    %71 = vmatpush1.msra.mxu0 %v55
    %72 = vmatprep.subr.mxu0 0.0
    %73 = vmatpush1.msra.mxu0 %v54
    %74 = vmatprep.subr.mxu0 0.0
    %75 = vmatpush1.msra.mxu0 %v53
    %76 = vmatprep.subr.mxu0 0.0
    %77 = vmatpush1.msra.mxu0 %v52
    %78 = vmatprep.subr.mxu0 0.0
    %79 = vmatpush1.msra.mxu0 %v51
    %80 = vmatprep.subr.mxu0 0.0
    %81 = vmatpush1.msra.mxu0 %v50
    %82 = vmatprep.subr.mxu0 0.0
    %83 = vmatpush1.msra.mxu0 %v49
    %84 = vmatprep.subr.mxu0 0.0
    %85 = vmatpush1.msra.mxu0 %v48
    %86 = vmatprep.subr.mxu0 0.0
    %87 = vmatpush1.msra.mxu0 %v47
    %88 = vmatprep.subr.mxu0 0.0
    %89 = vmatpush1.msra.mxu0 %v46
    %90 = vmatprep.subr.mxu0 0.0
    %91 = vmatpush1.msra.mxu0 %v45
    %92 = vmatprep.subr.mxu0 0.0
    %93 = vmatpush1.msra.mxu0 %v44
    %94 = vmatprep.subr.mxu0 0.0
    %95 = vmatpush1.msra.mxu0 %v43
    %96 = vmatprep.subr.mxu0 0.0
    %97 = vmatpush1.msra.mxu0 %v42
    %98 = vmatprep.subr.mxu0 0.0
    %99 = vmatpush2.msra.mxu0 0.0
    %100 = vmatprep.subr.mxu0 0.0
    %101 = vmatpush2.msra.mxu0 0.0
    %102 = vmatprep.subr.mxu0 0.0
    %103 = vmatpush2.msra.mxu0 0.0
    %104 = vmatprep.subr.mxu0 0.0
    %105 = vmatpush2.msra.mxu0 0.0
    %106 = vmatprep.subr.mxu0 0.0
    %107 = vmatpush2.msra.mxu0 0.0
    %108 = vmatprep.subr.mxu0 0.0
    %109 = vmatpush2.msra.mxu0 0.0
    %110 = vmatprep.subr.mxu0 0.0
    %111 = vmatpush2.msra.mxu0 0.0
    %112 = vmatprep.subr.mxu0 0.0
    %113 = vmatpush2.msra.mxu0 0.0
    %114 = vmatprep.subr.mxu0 0.0
    %115 = vmatpush2.msra.mxu0 0.0
    %116 = vmatprep.subr.mxu0 0.0
    %117 = vmatpush2.msra.mxu0 0.0
    %118 = vmatprep.subr.mxu0 0.0
    %119 = vmatpush2.msra.mxu0 0.0
    %120 = vmatprep.subr.mxu0 0.0
    %121 = vmatpush2.msra.mxu0 0.0
    %122 = vmatprep.subr.mxu0 0.0
    %123 = vmatpush2.msra.mxu0 0.0
    %124 = vmatprep.subr.mxu0 0.0
    %125 = vmatpush2.msra.mxu0 0.0
    %126 = vmatprep.subr.mxu0 0.0
    %127 = vmatpush2.msra.mxu0 0.0
    %128 = vmatprep.subr.mxu0 0.0
    %129 = vmatpush2.msra.mxu0 0.0
    %130 = vmatprep.mubr.f32.mxu0 0.0
    %131 = vmatmul.mubr.f32.gmra.mxu0 %v59
    %v132 = vpop.f32.mrf.mxu0
    %v133 = vadd.f32 %v64, %v132
    %v134 = vpop.f32.mrf.mxu0
    %135 = vdwg.mxu0
    %v136 = vmax.f32 %v133, 0.0
    %v137 = vld [vmem:[%s3] sm:$0xff]
    %v138 = vld [vmem:[%s3 + $0x8] sm:$0xff]
    %v139 = vld [vmem:[%s3 + $0x10] sm:$0xff]
    %v140 = vld [vmem:[%s3 + $0x18] sm:$0xff]
    %v141 = vld [vmem:[%s4] sm:$0x1]
    %v142 = vmul.f32 %v136, 0.25
    %v144 = vlaneseq
    %v145 = vshrl.u32 %v144, 7
    %v146 = vsub.s32 0, %v145
    %v147 = vrot.slane %v141, %v146
    %vm149 = vcmask 261120
    %v151 = vsel %vm149, %v142, 0
    %153 = vmatprep.subr.mxu0 0.0
    %154 = vmatpush1.msra.mxu0 0.0
    %155 = vmatprep.subr.mxu0 0.0
    %156 = vmatpush1.msra.mxu0 0.0
    %157 = vmatprep.subr.mxu0 0.0
    %158 = vmatpush1.msra.mxu0 0.0
    %159 = vmatprep.subr.mxu0 0.0
    %160 = vmatpush1.msra.mxu0 0.0
    %161 = vmatprep.subr.mxu0 0.0
    %162 = vmatpush1.msra.mxu0 0.0
    %163 = vmatprep.subr.mxu0 0.0
    %164 = vmatpush1.msra.mxu0 0.0
    %165 = vmatprep.subr.mxu0 0.0
    %166 = vmatpush1.msra.mxu0 0.0
    %167 = vmatprep.subr.mxu0 0.0
    %168 = vmatpush1.msra.mxu0 0.0
    %169 = vmatprep.subr.mxu0 0.0
    %170 = vmatpush1.msra.mxu0 0.0
    %171 = vmatprep.subr.mxu0 0.0
    %172 = vmatpush1.msra.mxu0 0.0
    %173 = vmatprep.subr.mxu0 0.0
    %174 = vmatpush1.msra.mxu0 0.0
    %175 = vmatprep.subr.mxu0 0.0
    %176 = vmatpush1.msra.mxu0 0.0
    %177 = vmatprep.subr.mxu0 0.0
    %178 = vmatpush1.msra.mxu0 %v140
    %179 = vmatprep.subr.mxu0 0.0
    %180 = vmatpush1.msra.mxu0 %v139
    %181 = vmatprep.subr.mxu0 0.0
    %182 = vmatpush1.msra.mxu0 %v138
    %183 = vmatprep.subr.mxu0 0.0
    %184 = vmatpush1.msra.mxu0 %v137
    %185 = vmatprep.subr.mxu0 0.0
    %186 = vmatpush2.msra.mxu0 0.0
    %187 = vmatprep.subr.mxu0 0.0
    %188 = vmatpush2.msra.mxu0 0.0
    %189 = vmatprep.subr.mxu0 0.0
    %190 = vmatpush2.msra.mxu0 0.0
    %191 = vmatprep.subr.mxu0 0.0
    %192 = vmatpush2.msra.mxu0 0.0
    %193 = vmatprep.subr.mxu0 0.0
    %194 = vmatpush2.msra.mxu0 0.0
    %195 = vmatprep.subr.mxu0 0.0
    %196 = vmatpush2.msra.mxu0 0.0
    %197 = vmatprep.subr.mxu0 0.0
    %198 = vmatpush2.msra.mxu0 0.0
    %199 = vmatprep.subr.mxu0 0.0
    %200 = vmatpush2.msra.mxu0 0.0
    %201 = vmatprep.subr.mxu0 0.0
    %202 = vmatpush2.msra.mxu0 0.0
    %203 = vmatprep.subr.mxu0 0.0
    %204 = vmatpush2.msra.mxu0 0.0
    %205 = vmatprep.subr.mxu0 0.0
    %206 = vmatpush2.msra.mxu0 0.0
    %207 = vmatprep.subr.mxu0 0.0
    %208 = vmatpush2.msra.mxu0 0.0
    %209 = vmatprep.subr.mxu0 0.0
    %210 = vmatpush2.msra.mxu0 0.0
    %211 = vmatprep.subr.mxu0 0.0
    %212 = vmatpush2.msra.mxu0 0.0
    %213 = vmatprep.subr.mxu0 0.0
    %214 = vmatpush2.msra.mxu0 0.0
    %215 = vmatprep.subr.mxu0 0.0
    %216 = vmatpush2.msra.mxu0 0.0
    %217 = vmatprep.mubr.f32.mxu0 0.0
    %218 = vmatmul.mubr.f32.gmra.mxu0 %v151
    %v219 = vpop.f32.mrf.mxu0
    %v220 = vadd.f32 %v147, %v219
    %v221 = vpop.f32.mrf.mxu0
    %222 = vdwg.mxu0
    %v223 = vmax.f32 %v220, 0.0
    %v224 = vld [vmem:[%s5] sm:$0xff]
    %v225 = vld [vmem:[%s5 + $0x8] sm:$0xff]
    %v226 = vld [vmem:[%s5 + $0x10] sm:$0xff]
    %v227 = vld [vmem:[%s5 + $0x18] sm:$0xff]
    %v228 = vld [vmem:[%s6] sm:$0x1]
    %v229 = vmul.f32 %v223, 0.25
    %v231 = vlaneseq
    %v232 = vshrl.u32 %v231, 7
    %v233 = vsub.s32 0, %v232
    %v234 = vrot.slane %v228, %v233
    %v237 = vsel %vm149, %v229, 0
    %239 = vmatprep.subr.mxu0 0.0
    %240 = vmatpush1.msra.mxu0 0.0
    %241 = vmatprep.subr.mxu0 0.0
    %242 = vmatpush1.msra.mxu0 0.0
    %243 = vmatprep.subr.mxu0 0.0
    %244 = vmatpush1.msra.mxu0 0.0
    %245 = vmatprep.subr.mxu0 0.0
    %246 = vmatpush1.msra.mxu0 0.0
    %247 = vmatprep.subr.mxu0 0.0
    %248 = vmatpush1.msra.mxu0 0.0
    %249 = vmatprep.subr.mxu0 0.0
    %250 = vmatpush1.msra.mxu0 0.0
    %251 = vmatprep.subr.mxu0 0.0
    %252 = vmatpush1.msra.mxu0 0.0
    %253 = vmatprep.subr.mxu0 0.0
    %254 = vmatpush1.msra.mxu0 0.0
    %255 = vmatprep.subr.mxu0 0.0
    %256 = vmatpush1.msra.mxu0 0.0
    %257 = vmatprep.subr.mxu0 0.0
    %258 = vmatpush1.msra.mxu0 0.0
    %259 = vmatprep.subr.mxu0 0.0
    %260 = vmatpush1.msra.mxu0 0.0
    %261 = vmatprep.subr.mxu0 0.0
    %262 = vmatpush1.msra.mxu0 0.0
    %263 = vmatprep.subr.mxu0 0.0
    %264 = vmatpush1.msra.mxu0 %v227
    %265 = vmatprep.subr.mxu0 0.0
    %266 = vmatpush1.msra.mxu0 %v226
    %267 = vmatprep.subr.mxu0 0.0
    %268 = vmatpush1.msra.mxu0 %v225
    %269 = vmatprep.subr.mxu0 0.0
    %270 = vmatpush1.msra.mxu0 %v224
    %271 = vmatprep.subr.mxu0 0.0
    %272 = vmatpush2.msra.mxu0 0.0
    %273 = vmatprep.subr.mxu0 0.0
    %274 = vmatpush2.msra.mxu0 0.0
    %275 = vmatprep.subr.mxu0 0.0
    %276 = vmatpush2.msra.mxu0 0.0
    %277 = vmatprep.subr.mxu0 0.0
    %278 = vmatpush2.msra.mxu0 0.0
    %279 = vmatprep.subr.mxu0 0.0
    %280 = vmatpush2.msra.mxu0 0.0
    %281 = vmatprep.subr.mxu0 0.0
    %282 = vmatpush2.msra.mxu0 0.0
    %283 = vmatprep.subr.mxu0 0.0
    %284 = vmatpush2.msra.mxu0 0.0
    %285 = vmatprep.subr.mxu0 0.0
    %286 = vmatpush2.msra.mxu0 0.0
    %287 = vmatprep.subr.mxu0 0.0
    %288 = vmatpush2.msra.mxu0 0.0
    %289 = vmatprep.subr.mxu0 0.0
    %290 = vmatpush2.msra.mxu0 0.0
    %291 = vmatprep.subr.mxu0 0.0
    %292 = vmatpush2.msra.mxu0 0.0
    %293 = vmatprep.subr.mxu0 0.0
    %294 = vmatpush2.msra.mxu0 0.0
    %295 = vmatprep.subr.mxu0 0.0
    %296 = vmatpush2.msra.mxu0 0.0
    %297 = vmatprep.subr.mxu0 0.0
    %298 = vmatpush2.msra.mxu0 0.0
    %299 = vmatprep.subr.mxu0 0.0
    %300 = vmatpush2.msra.mxu0 0.0
    %301 = vmatprep.subr.mxu0 0.0
    %302 = vmatpush2.msra.mxu0 0.0
    %303 = vmatprep.mubr.f32.mxu0 0.0
    %304 = vmatmul.mubr.f32.gmra.mxu0 %v237
    %v305 = vpop.f32.mrf.mxu0
    %v306 = vadd.f32 %v234, %v305
    %v307 = vpop.f32.mrf.mxu0
    %308 = vdwg.mxu0
    %v309 = vmax.f32 %v306, 0.0
    %v310 = vld [vmem:[%s7] sm:$0xff]
    %v311 = vld [vmem:[%s7 + $0x8] sm:$0xff]
    %v312 = vld [vmem:[%s7 + $0x10] sm:$0xff]
    %v313 = vld [vmem:[%s7 + $0x18] sm:$0xff]
    %v314 = vld [vmem:[%s8] sm:$0x1]
    %v315 = vmul.f32 %v309, 0.25
    %v317 = vlaneseq
    %v318 = vshrl.u32 %v317, 7
    %v319 = vsub.s32 0, %v318
    %v320 = vrot.slane %v314, %v319
    %v323 = vsel %vm149, %v315, 0
    %325 = vmatprep.subr.mxu0 0.0
    %326 = vmatpush1.msra.mxu0 0.0
    %327 = vmatprep.subr.mxu0 0.0
    %328 = vmatpush1.msra.mxu0 0.0
    %329 = vmatprep.subr.mxu0 0.0
    %330 = vmatpush1.msra.mxu0 0.0
    %331 = vmatprep.subr.mxu0 0.0
    %332 = vmatpush1.msra.mxu0 0.0
    %333 = vmatprep.subr.mxu0 0.0
    %334 = vmatpush1.msra.mxu0 0.0
    %335 = vmatprep.subr.mxu0 0.0
    %336 = vmatpush1.msra.mxu0 0.0
    %337 = vmatprep.subr.mxu0 0.0
    %338 = vmatpush1.msra.mxu0 0.0
    %339 = vmatprep.subr.mxu0 0.0
    %340 = vmatpush1.msra.mxu0 0.0
    %341 = vmatprep.subr.mxu0 0.0
    %342 = vmatpush1.msra.mxu0 0.0
    %343 = vmatprep.subr.mxu0 0.0
    %344 = vmatpush1.msra.mxu0 0.0
    %345 = vmatprep.subr.mxu0 0.0
    %346 = vmatpush1.msra.mxu0 0.0
    %347 = vmatprep.subr.mxu0 0.0
    %348 = vmatpush1.msra.mxu0 0.0
    %349 = vmatprep.subr.mxu0 0.0
    %350 = vmatpush1.msra.mxu0 %v313
    %351 = vmatprep.subr.mxu0 0.0
    %352 = vmatpush1.msra.mxu0 %v312
    %353 = vmatprep.subr.mxu0 0.0
    %354 = vmatpush1.msra.mxu0 %v311
    %355 = vmatprep.subr.mxu0 0.0
    %356 = vmatpush1.msra.mxu0 %v310
    %357 = vmatprep.subr.mxu0 0.0
    %358 = vmatpush2.msra.mxu0 0.0
    %359 = vmatprep.subr.mxu0 0.0
    %360 = vmatpush2.msra.mxu0 0.0
    %361 = vmatprep.subr.mxu0 0.0
    %362 = vmatpush2.msra.mxu0 0.0
    %363 = vmatprep.subr.mxu0 0.0
    %364 = vmatpush2.msra.mxu0 0.0
    %365 = vmatprep.subr.mxu0 0.0
    %366 = vmatpush2.msra.mxu0 0.0
    %367 = vmatprep.subr.mxu0 0.0
    %368 = vmatpush2.msra.mxu0 0.0
    %369 = vmatprep.subr.mxu0 0.0
    %370 = vmatpush2.msra.mxu0 0.0
    %371 = vmatprep.subr.mxu0 0.0
    %372 = vmatpush2.msra.mxu0 0.0
    %373 = vmatprep.subr.mxu0 0.0
    %374 = vmatpush2.msra.mxu0 0.0
    %375 = vmatprep.subr.mxu0 0.0
    %376 = vmatpush2.msra.mxu0 0.0
    %377 = vmatprep.subr.mxu0 0.0
    %378 = vmatpush2.msra.mxu0 0.0
    %379 = vmatprep.subr.mxu0 0.0
    %380 = vmatpush2.msra.mxu0 0.0
    %381 = vmatprep.subr.mxu0 0.0
    %382 = vmatpush2.msra.mxu0 0.0
    %383 = vmatprep.subr.mxu0 0.0
    %384 = vmatpush2.msra.mxu0 0.0
    %385 = vmatprep.subr.mxu0 0.0
    %386 = vmatpush2.msra.mxu0 0.0
    %387 = vmatprep.subr.mxu0 0.0
    %388 = vmatpush2.msra.mxu0 0.0
    %389 = vmatprep.mubr.f32.mxu0 0.0
    %390 = vmatmul.mubr.f32.gmra.mxu0 %v323
    %v391 = vpop.f32.mrf.mxu0
    %v392 = vadd.f32 %v320, %v391
    %v393 = vpop.f32.mrf.mxu0
    %394 = vdwg.mxu0
    %395 = vst [vmem:[#allocation2] sm:$0xff] %v392
    // Predicated region
    $region38: #{mapping_network.1} parent=1 // pred_check
      _
    $region39: #{mapping_network.1} parent=1 // pred_check_branch
      %397 = sbr.rel (0) target = $region41
    $region40: #{mapping_network.1} parent=1 // pred_region
      %s399 = ssub.s32 128, 128
      %400 = vsyncadd [#allocation3], %s399
      %s402 = sshll.u32 [#allocation2], 4
      %s403 = int_to_ptr.vmem [resolvable:$true] %s402
      %405 = dma.vmem_to_hbm [thread:$0]  %s403, 128, %s9, [#allocation3]
    $region41: #{mapping_network.1} parent=1 // pred_fallthru
      _
    // Predicated region
    $region42: #{mapping_network.1} parent=1 // pred_check
      _
    $region43: #{mapping_network.1} parent=1 // pred_check_branch
      %407 = sbr.rel (0) target = $region45
    $region44: #{mapping_network.1} parent=1 // pred_region
      %408 = dma.done [#allocation3], 128
    $region45: #{mapping_network.1} parent=1 // pred_fallthru
      _
    %409 = vsyncpa [#allocation3], 1

</llo_original>
